<compile_context>
chip_gen: v5e
topology: v5e:2x2
jax: 0.10.0
libtpu: 0.0.40
codegen_flags: <defaults>
</compile_context>

<pallas_src>
import jax
import jax.numpy as jnp
from jax.experimental import pallas as pl
from jax.experimental.pallas import tpu as pltpu


def _round_up(n, m):
    return ((n + m - 1) // m) * m


def _vmem_budget_bytes():
    """~85% of this chip's per-core VMEM; conservative 64 MiB fallback (v7x)."""
    cap = 64 * 2**20
    try:
        info = pltpu.get_tpu_info()
        cap = getattr(info, "vmem_capacity_bytes", cap) or cap
    except Exception:
        pass
    return int(0.85 * cap)


# ----------------------------------------------------------------------------
# Kernels
# ----------------------------------------------------------------------------
def _ffnn_fused_kernel(x_ref, w1_ref, b1_ref, w2_ref, b2_ref, out_ref):
    # Two MXU matmuls + VPU bias/ReLU fused in VMEM on one batch tile.
    x = x_ref[...]                                              # [TB, Dp]
    h = jnp.dot(x, w1_ref[...], preferred_element_type=jnp.float32)
    h = jnp.maximum(h + b1_ref[...], 0.0)                       # f32 bias + ReLU
    o = jnp.dot(h.astype(w2_ref.dtype), w2_ref[...],
                preferred_element_type=jnp.float32)
    out_ref[...] = (o + b2_ref[...]).astype(out_ref.dtype)      # [TB, Cp]


def _ffnn_ktiled_kernel(x_ref, w1_ref, b1_ref, w2_ref, b2_ref, out_ref, acc_ref):
    # Hidden-dim streaming: per k-step use the k-th slice of W1 columns / W2
    # rows.  ReLU is per hidden unit so slicing the hidden dim is exact.
    k = pl.program_id(1)

    @pl.when(k == 0)
    def _():
        acc_ref[...] = jnp.zeros_like(acc_ref)

    h = jnp.dot(x_ref[...], w1_ref[...], preferred_element_type=jnp.float32)
    h = jnp.maximum(h + b1_ref[...], 0.0)                       # [TB, tH]
    acc_ref[...] += jnp.dot(h.astype(w2_ref.dtype), w2_ref[...],
                            preferred_element_type=jnp.float32)

    @pl.when(k == pl.num_programs(1) - 1)
    def _():
        out_ref[...] = (acc_ref[...] + b2_ref[...]).astype(out_ref.dtype)


# ----------------------------------------------------------------------------
# Parameter preparation (hoisted out of the hot path)
# ----------------------------------------------------------------------------
def prepare_ffnn_params(w1, b1, w2, b2, *, compute_dtype=None):
    """Pad / cast parameters once.

    w1: [input_size, hidden_size]   (transposed vs. PyTorch [out, in])
    b1: [hidden_size]
    w2: [hidden_size, num_classes]  (transposed vs. PyTorch [out, in])
    b2: [num_classes]
    """
    D, H = w1.shape
    C = w2.shape[1]
    cdt = jnp.dtype(compute_dtype) if compute_dtype is not None else jnp.dtype(w1.dtype)

    # bf16 operands on large shapes: pad contraction/output dims to 256 so the
    # 2x256^2 MXU (v6e/v7x) is fully fed; otherwise 128 (one lane-width) is enough.
    lane = 256 if (cdt == jnp.bfloat16 and max(D, H, C) >= 256) else 128
    Dp, Hp, Cp = (_round_up(d, lane) for d in (D, H, C))

    w1p = jnp.pad(w1.astype(cdt), ((0, Dp - D), (0, Hp - H)))
    w2p = jnp.pad(w2.astype(cdt), ((0, Hp - H), (0, Cp - C)))
    # Biases stay f32: bias-add/ReLU epilogue runs in f32 on the VPU (v5e-safe).
    b1p = jnp.pad(b1.astype(jnp.float32), (0, Hp - H)).reshape(1, Hp)
    b2p = jnp.pad(b2.astype(jnp.float32), (0, Cp - C)).reshape(1, Cp)

    return dict(w1=w1p, b1=b1p, w2=w2p, b2=b2p,
                dims=(D, H, C), padded=(Dp, Hp, Cp), compute_dtype=cdt)


# ----------------------------------------------------------------------------
# Forward
# ----------------------------------------------------------------------------
def ffnn_forward(x, params, *, max_block_b=512, force_hidden_tiling=False,
                 hidden_tile=None):
    """y = relu(x @ w1 + b1) @ w2 + b2, returns [B, num_classes]."""
    D, H, C = params["dims"]
    Dp, Hp, Cp = params["padded"]
    cdt = params["compute_dtype"]
    w1p, b1p, w2p, b2p = params["w1"], params["b1"], params["w2"], params["b2"]

    B = x.shape[0]
    out_dtype = x.dtype
    itemsize = jnp.dtype(cdt).itemsize
    f32 = 4
    # Sublane packing minimum for the batch tile: 8 (f32) / 16 (bf16) / 32 (int8).
    sub = {4: 8, 2: 16, 1: 32}.get(itemsize, 8)

    # Batch tile: as large as allowed, but split into >=2 tiles when the batch
    # is big enough so the "parallel" axis feeds both v7x TensorCores.
    TB = min(_round_up(B, sub), max_block_b)
    if B >= 2 * sub and _round_up(B, TB) // TB < 2:
        TB = _round_up(pl.cdiv(B, 2), sub)
    Bp = _round_up(B, TB)

    xp = x.astype(cdt)
    if Bp != B or Dp != D:        # skip the pad entirely when already aligned
        xp = jnp.pad(xp, ((0, Bp - B), (0, Dp - D)))

    budget = _vmem_budget_bytes()

    # Fused-plan footprint: single-buffered resident weights (Buffered(1)),
    # double-buffered x / out tiles, f32 h intermediate + epilogue temp.
    fused_bytes = ((Dp * Hp + Hp * Cp) * itemsize
                   + (Hp + Cp) * f32
                   + 2 * TB * Dp * itemsize
                   + 2 * TB * Cp * itemsize
                   + TB * Hp * f32
                   + TB * Cp * f32)

    cost = pl.CostEstimate(
        flops=2 * Bp * (Dp * Hp + Hp * Cp),
        transcendentals=0,
        bytes_accessed=(Bp * Dp + Bp * Cp) * itemsize
                       + (Dp * Hp + Hp * Cp) * itemsize + (Hp + Cp) * f32,
    )

    resident = pl.Buffered(1)     # constant-index blocks: one VMEM buffer

    if not force_hidden_tiling and fused_bytes <= budget:
        # ---- Plan A: weights fully VMEM-resident, batch-only grid ----------
        out_p = pl.pallas_call(
            _ffnn_fused_kernel,
            out_shape=jax.ShapeDtypeStruct((Bp, Cp), out_dtype),
            grid=(Bp // TB,),
            in_specs=[
                pl.BlockSpec((TB, Dp), lambda i: (i, 0)),                       # x
                pl.BlockSpec((Dp, Hp), lambda i: (0, 0), pipeline_mode=resident),  # w1
                pl.BlockSpec((1, Hp), lambda i: (0, 0), pipeline_mode=resident),   # b1
                pl.BlockSpec((Hp, Cp), lambda i: (0, 0), pipeline_mode=resident),  # w2
                pl.BlockSpec((1, Cp), lambda i: (0, 0), pipeline_mode=resident),   # b2
            ],
            out_specs=pl.BlockSpec((TB, Cp), lambda i: (i, 0)),
            compiler_params=pltpu.CompilerParams(
                dimension_semantics=("parallel",),
                vmem_limit_bytes=budget),
            cost_estimate=cost,
        )(xp, w1p, b1p, w2p, b2p)
    else:
        # ---- Plan B: stream hidden-dim slices of W1 / W2 (large shapes) ----
        tH = hidden_tile if hidden_tile is not None else min(512, Hp)
        tH = max(128, _round_up(tH, 128))

        def ktiled_bytes(t):
            return ((Dp * t + t * Cp) * itemsize * 2   # streamed W1/W2 slices (dbl-buf)
                    + 2 * TB * Dp * itemsize           # x tile
                    + 2 * TB * Cp * itemsize           # out tile
                    + TB * Cp * f32                    # accumulator scratch
                    + TB * t * f32                     # h slice
                    + 2 * t * f32 + Cp * f32)          # biases

        while tH > 128 and ktiled_bytes(tH) > budget:
            tH //= 2

        Hp_t = _round_up(Hp, tH)
        if Hp_t != Hp:            # re-pad hidden dim to a multiple of the tile
            w1p = jnp.pad(w1p, ((0, 0), (0, Hp_t - Hp)))
            b1p = jnp.pad(b1p, ((0, 0), (0, Hp_t - Hp)))
            w2p = jnp.pad(w2p, ((0, Hp_t - Hp), (0, 0)))
            Hp = Hp_t

        out_p = pl.pallas_call(
            _ffnn_ktiled_kernel,
            out_shape=jax.ShapeDtypeStruct((Bp, Cp), out_dtype),
            grid=(Bp // TB, Hp // tH),
            in_specs=[
                pl.BlockSpec((TB, Dp), lambda i, k: (i, 0)),                      # x
                pl.BlockSpec((Dp, tH), lambda i, k: (0, k)),                      # w1 slice
                pl.BlockSpec((1, tH), lambda i, k: (0, k)),                       # b1 slice
                pl.BlockSpec((tH, Cp), lambda i, k: (k, 0)),                      # w2 slice
                pl.BlockSpec((1, Cp), lambda i, k: (0, 0), pipeline_mode=resident),  # b2
            ],
            out_specs=pl.BlockSpec((TB, Cp), lambda i, k: (i, 0)),
            scratch_shapes=[pltpu.VMEM((TB, Cp), jnp.float32)],
            compiler_params=pltpu.CompilerParams(
                dimension_semantics=("parallel", "arbitrary"),
                vmem_limit_bytes=budget),
            cost_estimate=cost,
        )(xp, w1p, b1p, w2p, b2p)

    if Bp != B or Cp != C:
        out_p = out_p[:B, :C]
    return out_p


# ----------------------------------------------------------------------------
# Self-test
# ----------------------------------------------------------------------------
if __name__ == "__main__":
    key = jax.random.PRNGKey(0)

    def make_problem(key, batch, input_size, hidden_size, num_classes):
        kx, k1, kb1, k2, kb2 = jax.random.split(key, 5)
        x = jax.random.normal(kx, (batch, input_size), dtype=jnp.float32)
        # PyTorch Linear stores W as [out, in]; build that way, transpose for kernel.
        bound1 = 1.0 / (input_size ** 0.5)
        w1_pt = jax.random.uniform(k1, (hidden_size, input_size),
                                   minval=-bound1, maxval=bound1, dtype=jnp.float32)
        b1 = jax.random.uniform(kb1, (hidden_size,),
                                minval=-bound1, maxval=bound1, dtype=jnp.float32)
        bound2 = 1.0 / (hidden_size ** 0.5)
        w2_pt = jax.random.uniform(k2, (num_classes, hidden_size),
                                   minval=-bound2, maxval=bound2, dtype=jnp.float32)
        b2 = jax.random.uniform(kb2, (num_classes,),
                                minval=-bound2, maxval=bound2, dtype=jnp.float32)
        return x, w1_pt.T, b1, w2_pt.T, b2

    # --- Test 1: small shapes from the module spec, fused (resident) plan ---
    x, w1, b1, w2, b2 = make_problem(key, batch=8, input_size=16,
                                     hidden_size=32, num_classes=8)
    params = prepare_ffnn_params(w1, b1, w2, b2)          # pad once, not per call
    out = jax.block_until_ready(ffnn_forward(x, params))
    ref = jnp.maximum(x @ w1 + b1, 0.0) @ w2 + b2
    assert out.shape == (8, 8)
    assert jnp.allclose(out, ref, atol=1e-5, rtol=1e-5)

    # --- Test 2: exercise the hidden-dim-tiled (K-streaming) plan -----------
    k2key = jax.random.PRNGKey(1)
    x2, w1b, b1b, w2b, b2b = make_problem(k2key, batch=32, input_size=64,
                                          hidden_size=256, num_classes=10)
    params2 = prepare_ffnn_params(w1b, b1b, w2b, b2b)
    out2 = jax.block_until_ready(
        ffnn_forward(x2, params2, force_hidden_tiling=True, hidden_tile=128))
    ref2 = jnp.maximum(x2 @ w1b + b1b, 0.0) @ w2b + b2b
    assert out2.shape == (32, 10)
    assert jnp.allclose(out2, ref2, atol=1e-4, rtol=1e-4)

    # TODO(synk): for production-scale shapes on v7x/v6e, build params with
    # compute_dtype=jnp.bfloat16 to hit the bf16 MXU rate and halve VMEM/HBM
    # traffic (accumulation stays f32 via preferred_element_type).
    print("KERNEL_OK")
</pallas_src>

<mosaic_0001>
module attributes {stable_mosaic.version = 11 : i64} {
  func.func @_ffnn_fused_kernel(%arg0: i32, %arg1: memref<8x128xf32, #tpu.memory_space<vmem>>, %arg2: memref<128x128xf32, #tpu.memory_space<vmem>>, %arg3: memref<1x128xf32, #tpu.memory_space<vmem>>, %arg4: memref<128x128xf32, #tpu.memory_space<vmem>>, %arg5: memref<1x128xf32, #tpu.memory_space<vmem>>, %arg6: memref<8x128xf32, #tpu.memory_space<vmem>>) attributes {dimension_semantics = [#tpu.dimension_semantics<parallel>], iteration_bounds = array<i64: 1>, scalar_prefetch = 0 : i64, scratch_operands = 0 : i64, tpu.core_type = #tpu.core_type<tc>, window_params = [{transform_indices = @transform_0, window_bounds = array<i64: 8, 128>}, {pipeline_mode = #tpu.pipeline_mode<synchronous>, transform_indices = @transform_1, window_bounds = array<i64: 128, 128>}, {pipeline_mode = #tpu.pipeline_mode<synchronous>, transform_indices = @transform_2, window_bounds = array<i64: 1, 128>}, {pipeline_mode = #tpu.pipeline_mode<synchronous>, transform_indices = @transform_3, window_bounds = array<i64: 128, 128>}, {pipeline_mode = #tpu.pipeline_mode<synchronous>, transform_indices = @transform_4, window_bounds = array<i64: 1, 128>}, {transform_indices = @transform_5, window_bounds = array<i64: 8, 128>}]} {
    %c0 = arith.constant 0 : index
    %c0_0 = arith.constant 0 : index
    %0 = vector.load %arg1[%c0, %c0_0] : memref<8x128xf32, #tpu.memory_space<vmem>>, vector<8x128xf32>
    %c0_1 = arith.constant 0 : index
    %c0_2 = arith.constant 0 : index
    %1 = vector.load %arg2[%c0_1, %c0_2] : memref<128x128xf32, #tpu.memory_space<vmem>>, vector<128x128xf32>
    %cst = arith.constant dense<0.000000e+00> : vector<8x128xf32>
    %2 = tpu.matmul %0, %1, %cst {dimension_numbers = #tpu.dot_dimension_numbers<[1], [0], [0], [1], [0, 0, 1, 1], [], []>} : vector<8x128xf32>, vector<128x128xf32>, vector<8x128xf32> -> vector<8x128xf32>
    %c0_3 = arith.constant 0 : index
    %c0_4 = arith.constant 0 : index
    %3 = vector.load %arg3[%c0_3, %c0_4] : memref<1x128xf32, #tpu.memory_space<vmem>>, vector<1x128xf32>
    %4 = vector.broadcast %3 : vector<1x128xf32> to vector<8x128xf32>
    %5 = arith.addf %2, %4 : vector<8x128xf32>
    %cst_5 = arith.constant 0.000000e+00 : f32
    %6 = vector.broadcast %cst_5 : f32 to vector<8x128xf32>
    %7 = arith.maximumf %5, %6 : vector<8x128xf32>
    %c0_6 = arith.constant 0 : index
    %c0_7 = arith.constant 0 : index
    %8 = vector.load %arg4[%c0_6, %c0_7] : memref<128x128xf32, #tpu.memory_space<vmem>>, vector<128x128xf32>
    %cst_8 = arith.constant dense<0.000000e+00> : vector<8x128xf32>
    %9 = tpu.matmul %7, %8, %cst_8 {dimension_numbers = #tpu.dot_dimension_numbers<[1], [0], [0], [1], [0, 0, 1, 1], [], []>} : vector<8x128xf32>, vector<128x128xf32>, vector<8x128xf32> -> vector<8x128xf32>
    %c0_9 = arith.constant 0 : index
    %c0_10 = arith.constant 0 : index
    %10 = vector.load %arg5[%c0_9, %c0_10] : memref<1x128xf32, #tpu.memory_space<vmem>>, vector<1x128xf32>
    %11 = vector.broadcast %10 : vector<1x128xf32> to vector<8x128xf32>
    %12 = arith.addf %9, %11 : vector<8x128xf32>
    %c0_11 = arith.constant 0 : index
    %c0_12 = arith.constant 0 : index
    %13 = vector.load %arg6[%c0_11, %c0_12] : memref<8x128xf32, #tpu.memory_space<vmem>>, vector<8x128xf32>
    tpu.vector_store %arg6[%c0_11, %c0_12], %12 {strides = array<i32>} : memref<8x128xf32, #tpu.memory_space<vmem>>, vector<8x128xf32>,
    return
  }
  func.func @transform_0(%arg0: i32) -> (i32, i32) {
    %c0_i32 = arith.constant 0 : i32
    %c0_i32_0 = arith.constant 0 : i32
    return %arg0, %c0_i32 : i32, i32
  }
  func.func @transform_1(%arg0: i32) -> (i32, i32) {
    %c0_i32 = arith.constant 0 : i32
    %c0_i32_0 = arith.constant 0 : i32
    %c0_i32_1 = arith.constant 0 : i32
    return %c0_i32, %c0_i32_0 : i32, i32
  }
  func.func @transform_2(%arg0: i32) -> (i32, i32) {
    %c0_i32 = arith.constant 0 : i32
    %c0_i32_0 = arith.constant 0 : i32
    %c0_i32_1 = arith.constant 0 : i32
    return %c0_i32, %c0_i32_0 : i32, i32
  }
  func.func @transform_3(%arg0: i32) -> (i32, i32) {
    %c0_i32 = arith.constant 0 : i32
    %c0_i32_0 = arith.constant 0 : i32
    %c0_i32_1 = arith.constant 0 : i32
    return %c0_i32, %c0_i32_0 : i32, i32
  }
  func.func @transform_4(%arg0: i32) -> (i32, i32) {
    %c0_i32 = arith.constant 0 : i32
    %c0_i32_0 = arith.constant 0 : i32
    %c0_i32_1 = arith.constant 0 : i32
    return %c0_i32, %c0_i32_0 : i32, i32
  }
  func.func @transform_5(%arg0: i32) -> (i32, i32) {
    %c0_i32 = arith.constant 0 : i32
    %c0_i32_0 = arith.constant 0 : i32
    return %arg0, %c0_i32 : i32, i32
  }
}

</mosaic_0001>

<llo_original>
// kernel: tpu_custom_call.1
$region0: #{tpu_custom_call.1}
  #allocation0 [shape = 'u32[]', space=smem, size = 0x4, offset = 0x4, fixed_abs, tag = 'smem constant byte address 0x4 - core index']
  #allocation1 [shape = 'u32[72,128]{1,0:T(1,128)}', space=vmem, size = 0x9000, scoped, tag = 'internal scratch']
  %s0 = inlined_call_operand.hbm [shape: f32[8,128], index: 0, kind: input, shape index: {}]
  %s1 = inlined_call_operand.hbm [shape: f32[128,128], index: 1, kind: input, shape index: {}]
  %s2 = inlined_call_operand.vmem [shape: f32[1,128], index: 2, kind: input, shape index: {}]
  %s3 = inlined_call_operand.hbm [shape: f32[128,128], index: 3, kind: input, shape index: {}]
  %s4 = inlined_call_operand.vmem [shape: f32[1,128], index: 4, kind: input, shape index: {}]
  %s5 = inlined_call_operand.hbm [shape: f32[8,128], index: 5, kind: output, shape index: {}]
  %s6 = sld [smem:[#allocation0]]
  $region42: #{tpu_custom_call.1} parent=0
    _
  %s8 = ssub.s32 1, %s6
  %s9 = scalar_select 0, %s8, %s6
  $region1: #{tpu_custom_call.1} parent=0
    #allocation2 [shape = 'u8[4096]{0}', space=vmem, size = 0x1000, scoped, tag = 'input window, operand 0, single buffered']
    #allocation3 [shape = 's32[1]{0}', space=sflag, size = 0x4, scoped, tag = 'scoped memory for tpu_custom_call.1']
    #allocation4 [shape = 's32[1]{0}', space=sflag, size = 0x4, scoped, tag = 'scoped memory for tpu_custom_call.1']
    #allocation5 [shape = 'u8[65536]{0}', space=vmem, size = 0x10000, scoped, tag = 'input window, operand 1, single buffered']
    #allocation6 [shape = 's32[1]{0}', space=sflag, size = 0x4, scoped, tag = 'scoped memory for tpu_custom_call.1']
    #allocation7 [shape = 'u8[65536]{0}', space=vmem, size = 0x10000, scoped, tag = 'input window, operand 3, single buffered']
    #allocation8 [shape = 'u8[4096]{0}', space=vmem, size = 0x1000, scoped, tag = 'output window, operand 0, single buffered']
    %10 = vsyncpa [#allocation3], 0
    %11 = vsyncpa [#allocation6], 0
    %12 = vsyncpa [#allocation4], 0
    // Predicated region
    $region2: #{tpu_custom_call.1} parent=1 // pred_check
      _
    $region3: #{tpu_custom_call.1} parent=1 // pred_check_branch
      %14 = sbr.rel (0) target = $region5
    $region4: #{tpu_custom_call.1} parent=1 // pred_region
      %16 = vsyncadd [#allocation3], 0
      %s18 = sshll.u32 %s0, 4
      %s19 = int_to_ptr.hbm [resolvable:$true] %s18
      %s20 = sshll.u32 [#allocation2], 4
      %s21 = int_to_ptr.vmem [resolvable:$true] %s20
      %23 = dma.hbm_to_vmem [thread:$0]  %s19, 128, %s21, [#allocation3]
    $region5: #{tpu_custom_call.1} parent=1 // pred_fallthru
      _
    // Predicated region
    $region6: #{tpu_custom_call.1} parent=1 // pred_check
      _
    $region7: #{tpu_custom_call.1} parent=1 // pred_check_branch
      %25 = sbr.rel (0) target = $region9
    $region8: #{tpu_custom_call.1} parent=1 // pred_region
      %27 = vsyncadd [#allocation6], 0
      %s28 = sshll.u32 %s1, 4
      %s29 = int_to_ptr.hbm [resolvable:$true] %s28
      %s30 = sshll.u32 [#allocation5], 4
      %s31 = int_to_ptr.vmem [resolvable:$true] %s30
      %36 = dma.hbm_to_vmem [thread:$0]  %s29, 2048, %s31, [#allocation6], 128, 128, 8
    $region9: #{tpu_custom_call.1} parent=1 // pred_fallthru
      _
    // Predicated region
    $region10: #{tpu_custom_call.1} parent=1 // pred_check
      _
    $region11: #{tpu_custom_call.1} parent=1 // pred_check_branch
      %38 = sbr.rel (0) target = $region13
    $region12: #{tpu_custom_call.1} parent=1 // pred_region
      _
    $region13: #{tpu_custom_call.1} parent=1 // pred_fallthru
      _
    // Predicated region
    $region14: #{tpu_custom_call.1} parent=1 // pred_check
      _
    $region15: #{tpu_custom_call.1} parent=1 // pred_check_branch
      %40 = sbr.rel (0) target = $region17
    $region16: #{tpu_custom_call.1} parent=1 // pred_region
      %42 = vsyncadd [#allocation6], 0
      %s43 = sshll.u32 %s3, 4
      %s44 = int_to_ptr.hbm [resolvable:$true] %s43
      %s45 = sshll.u32 [#allocation7], 4
      %s46 = int_to_ptr.vmem [resolvable:$true] %s45
      %51 = dma.hbm_to_vmem [thread:$0]  %s44, 2048, %s46, [#allocation6], 128, 128, 8
    $region17: #{tpu_custom_call.1} parent=1 // pred_fallthru
      _
    // Predicated region
    $region18: #{tpu_custom_call.1} parent=1 // pred_check
      _
    $region19: #{tpu_custom_call.1} parent=1 // pred_check_branch
      %53 = sbr.rel (0) target = $region21
    $region20: #{tpu_custom_call.1} parent=1 // pred_region
      _
    $region21: #{tpu_custom_call.1} parent=1 // pred_fallthru
      _
    // Predicated region
    $region22: #{tpu_custom_call.1} parent=1 // pred_check
      _
    $region23: #{tpu_custom_call.1} parent=1 // pred_check_branch
      %55 = sbr.rel (0) target = $region25
    $region24: #{tpu_custom_call.1} parent=1 // pred_region
      %57 = dma.done [#allocation3], 128
    $region25: #{tpu_custom_call.1} parent=1 // pred_fallthru
      _
    // Predicated region
    $region26: #{tpu_custom_call.1} parent=1 // pred_check
      _
    $region27: #{tpu_custom_call.1} parent=1 // pred_check_branch
      %59 = sbr.rel (0) target = $region29
    $region28: #{tpu_custom_call.1} parent=1 // pred_region
      %61 = dma.done [#allocation6], 2048
    $region29: #{tpu_custom_call.1} parent=1 // pred_fallthru
      _
    // Predicated region
    $region30: #{tpu_custom_call.1} parent=1 // pred_check
      _
    $region31: #{tpu_custom_call.1} parent=1 // pred_check_branch
      %63 = sbr.rel (0) target = $region33
    $region32: #{tpu_custom_call.1} parent=1 // pred_region
      %65 = dma.done [#allocation6], 2048
    $region33: #{tpu_custom_call.1} parent=1 // pred_fallthru
      _
    %v66 = vld [vmem:[#allocation2] sm:$0xff]
    %v67 = vld [vmem:[#allocation5] sm:$0xff]
    %v68 = vld [vmem:[#allocation5 + $0x8] sm:$0xff]
    %v69 = vld [vmem:[#allocation5 + $0x10] sm:$0xff]
    %v70 = vld [vmem:[#allocation5 + $0x18] sm:$0xff]
    %v71 = vld [vmem:[#allocation5 + $0x20] sm:$0xff]
    %v72 = vld [vmem:[#allocation5 + $0x28] sm:$0xff]
    %v73 = vld [vmem:[#allocation5 + $0x30] sm:$0xff]
    %v74 = vld [vmem:[#allocation5 + $0x38] sm:$0xff]
    %v75 = vld [vmem:[#allocation5 + $0x40] sm:$0xff]
    %v76 = vld [vmem:[#allocation5 + $0x48] sm:$0xff]
    %v77 = vld [vmem:[#allocation5 + $0x50] sm:$0xff]
    %v78 = vld [vmem:[#allocation5 + $0x58] sm:$0xff]
    %v79 = vld [vmem:[#allocation5 + $0x60] sm:$0xff]
    %v80 = vld [vmem:[#allocation5 + $0x68] sm:$0xff]
    %v81 = vld [vmem:[#allocation5 + $0x70] sm:$0xff]
    %v82 = vld [vmem:[#allocation5 + $0x78] sm:$0xff]
    %v83 = vld [vmem:[%s2] sm:$0x1]
    %v85 = vperm.slane %v83, 0
    %87 = vmatpush.msra.mxu0 %v82
    %88 = vmatpush.msra.mxu0 %v81
    %89 = vmatpush.msra.mxu0 %v80
    %90 = vmatpush.msra.mxu0 %v79
    %91 = vmatpush.msra.mxu0 %v78
    %92 = vmatpush.msra.mxu0 %v77
    %93 = vmatpush.msra.mxu0 %v76
    %94 = vmatpush.msra.mxu0 %v75
    %95 = vmatpush.msra.mxu0 %v74
    %96 = vmatpush.msra.mxu0 %v73
    %97 = vmatpush.msra.mxu0 %v72
    %98 = vmatpush.msra.mxu0 %v71
    %99 = vmatpush.msra.mxu0 %v70
    %100 = vmatpush.msra.mxu0 %v69
    %101 = vmatpush.msra.mxu0 %v68
    %102 = vmatpush.msra.mxu0 %v67
    %103 = vmatmul.f32.gmra.mxu0 %v66
    %v104 = vpop.f32.mrf.mxu0
    %v105 = vadd.f32 %v85, %v104
    %106 = vdwg.mxu0
    %v107 = vmax.f32 %v105, 0.0
    %v108 = vld [vmem:[#allocation7] sm:$0xff]
    %v109 = vld [vmem:[#allocation7 + $0x8] sm:$0xff]
    %v110 = vld [vmem:[#allocation7 + $0x10] sm:$0xff]
    %v111 = vld [vmem:[#allocation7 + $0x18] sm:$0xff]
    %v112 = vld [vmem:[#allocation7 + $0x20] sm:$0xff]
    %v113 = vld [vmem:[#allocation7 + $0x28] sm:$0xff]
    %v114 = vld [vmem:[#allocation7 + $0x30] sm:$0xff]
    %v115 = vld [vmem:[#allocation7 + $0x38] sm:$0xff]
    %v116 = vld [vmem:[#allocation7 + $0x40] sm:$0xff]
    %v117 = vld [vmem:[#allocation7 + $0x48] sm:$0xff]
    %v118 = vld [vmem:[#allocation7 + $0x50] sm:$0xff]
    %v119 = vld [vmem:[#allocation7 + $0x58] sm:$0xff]
    %v120 = vld [vmem:[#allocation7 + $0x60] sm:$0xff]
    %v121 = vld [vmem:[#allocation7 + $0x68] sm:$0xff]
    %v122 = vld [vmem:[#allocation7 + $0x70] sm:$0xff]
    %v123 = vld [vmem:[#allocation7 + $0x78] sm:$0xff]
    %v124 = vld [vmem:[%s4] sm:$0x1]
    %v126 = vperm.slane %v124, 0
    %128 = vmatpush.msra.mxu0 %v123
    %129 = vmatpush.msra.mxu0 %v122
    %130 = vmatpush.msra.mxu0 %v121
    %131 = vmatpush.msra.mxu0 %v120
    %132 = vmatpush.msra.mxu0 %v119
    %133 = vmatpush.msra.mxu0 %v118
    %134 = vmatpush.msra.mxu0 %v117
    %135 = vmatpush.msra.mxu0 %v116
    %136 = vmatpush.msra.mxu0 %v115
    %137 = vmatpush.msra.mxu0 %v114
    %138 = vmatpush.msra.mxu0 %v113
    %139 = vmatpush.msra.mxu0 %v112
    %140 = vmatpush.msra.mxu0 %v111
    %141 = vmatpush.msra.mxu0 %v110
    %142 = vmatpush.msra.mxu0 %v109
    %143 = vmatpush.msra.mxu0 %v108
    %144 = vmatmul.f32.gmra.mxu0 %v107
    %v145 = vpop.f32.mrf.mxu0
    %v146 = vadd.f32 %v126, %v145
    %147 = vdwg.mxu0
    %148 = vst [vmem:[#allocation8] sm:$0xff] %v146
    // Predicated region
    $region34: #{tpu_custom_call.1} parent=1 // pred_check
      _
    $region35: #{tpu_custom_call.1} parent=1 // pred_check_branch
      %150 = sbr.rel (0) target = $region37
    $region36: #{tpu_custom_call.1} parent=1 // pred_region
      %152 = vsyncadd [#allocation4], 0
      %s154 = sshll.u32 [#allocation8], 4
      %s155 = int_to_ptr.vmem [resolvable:$true] %s154
      %s156 = sshll.u32 %s5, 4
      %s157 = int_to_ptr.hbm [resolvable:$true] %s156
      %159 = dma.vmem_to_hbm [thread:$0]  %s155, 128, %s157, [#allocation4]
    $region37: #{tpu_custom_call.1} parent=1 // pred_fallthru
      _
    // Predicated region
    $region38: #{tpu_custom_call.1} parent=1 // pred_check
      _
    $region39: #{tpu_custom_call.1} parent=1 // pred_check_branch
      %161 = sbr.rel (0) target = $region41
    $region40: #{tpu_custom_call.1} parent=1 // pred_region
      %163 = dma.done [#allocation4], 128
    $region41: #{tpu_custom_call.1} parent=1 // pred_fallthru
      _
    %164 = vsyncpa [#allocation3], 1
    %165 = vsyncpa [#allocation6], 1
    %166 = vsyncpa [#allocation4], 1

</llo_original>
